<compile_context>
chip_gen: v5e
topology: v5e:2x2
jax: 0.10.0
libtpu: 0.0.40
codegen_flags: <defaults>
</compile_context>

<pallas_src>
import functools

import jax
import jax.numpy as jnp
from jax import lax
from jax.experimental import pallas as pl
from jax.experimental.pallas import tpu as pltpu


_BLOCK_BUDGET = 4 * 1024 * 1024     # ~4 MiB x-blocks: >=85% of HBM roofline
_MIN_BLOCK = 256 * 1024             # don't shrink blocks below this for steps
_MIN_STEPS = 4                      # aim for >=4 grid steps (2-TC pipelining)
_VMEM_LIMIT = 32 * 1024 * 1024      # safe scoped-VMEM limit on v5e/v6e/v7x


# ---------------------------------------------------------------------------
# Fused single-pass kernels (whole (C, HW) slab per batch tile fits in VMEM).
# ---------------------------------------------------------------------------

def _se_kernel_plain(x_ref, w1_ref, w2_ref, o_ref, *, inv_hw):
    # x_ref/o_ref: (TB, C, HW)   w1_ref: (C, Cr)   w2_ref: (Cr, C)
    x = x_ref[...]
    y = jnp.sum(x, axis=2, dtype=jnp.float32) * inv_hw              # (TB, C)
    h = jnp.maximum(
        jnp.dot(y, w1_ref[...], preferred_element_type=jnp.float32), 0.0)
    s = jax.nn.sigmoid(
        jnp.dot(h, w2_ref[...], preferred_element_type=jnp.float32))
    o_ref[...] = x * s[:, :, None].astype(x.dtype)


def _se_kernel_grouped(x_ref, w1_ref, w2_ref, o_ref, *, inv_hw, hw, g):
    # Lane-dense layout: x_ref/o_ref are (TB, C/g, g*HW) with g*HW == 128.
    # Channel c = cg*g + k lives at group row cg, lane slice [k*HW, (k+1)*HW).
    # w1_ref: (g, C/g, Cr) with w1_ref[k, cg] = W1[cg*g + k]
    # w2_ref: (g, Cr, C/g) with w2_ref[k, :, cg] = W2[:, cg*g + k]
    x = x_ref[...]
    parts = [x[:, :, k * hw:(k + 1) * hw] for k in range(g)]

    # Squeeze + first excite layer, one lane group at a time (f32 accumulate).
    h = None
    for k in range(g):
        yk = jnp.sum(parts[k], axis=2, dtype=jnp.float32) * inv_hw  # (TB, Cg)
        hk = jnp.dot(yk, w1_ref[k], preferred_element_type=jnp.float32)
        h = hk if h is None else h + hk
    h = jnp.maximum(h, 0.0)                                         # (TB, Cr)

    # Second excite layer + sigmoid + rescale per lane group; reassemble and do
    # a single dense 128-lane store of the whole block.
    outs = []
    for k in range(g):
        sk = jax.nn.sigmoid(
            jnp.dot(h, w2_ref[k], preferred_element_type=jnp.float32))
        outs.append(parts[k] * sk[:, :, None].astype(x.dtype))
    o_ref[...] = jnp.concatenate(outs, axis=2)


def _pick_batch_tile(B, per_batch_bytes):
    """Batch-tile size: ~_BLOCK_BUDGET blocks, preferring >=_MIN_STEPS grid
    steps as long as blocks stay >=_MIN_BLOCK.  Non-divisor tiles are fine
    (pl.cdiv grid + Pallas edge masking on the ragged last block)."""
    tb = max(1, min(B, _BLOCK_BUDGET // max(1, per_batch_bytes)))
    target = pl.cdiv(B, _MIN_STEPS)
    if tb > target and target * per_batch_bytes >= _MIN_BLOCK:
        tb = target
    return tb


def _se_fused(kernel, x3, w1, w2, cost):
    B = x3.shape[0]
    itemsize = jnp.dtype(x3.dtype).itemsize
    per_batch_bytes = x3.shape[1] * x3.shape[2] * itemsize
    tb = _pick_batch_tile(B, per_batch_bytes)
    grid = (pl.cdiv(B, tb),)
    block = (tb,) + x3.shape[1:]

    def wspec(w):
        # Constant index_map -> weights DMA'd once and kept resident.
        return pl.BlockSpec(w.shape, lambda b, _z=(0,) * w.ndim: _z)

    return pl.pallas_call(
        kernel,
        out_shape=jax.ShapeDtypeStruct(x3.shape, x3.dtype),
        grid_spec=pltpu.PrefetchScalarGridSpec(
            num_scalar_prefetch=0,
            grid=grid,
            in_specs=[pl.BlockSpec(block, lambda b: (b, 0, 0)),
                      wspec(w1), wspec(w2)],
            out_specs=pl.BlockSpec(block, lambda b: (b, 0, 0)),
        ),
        # NOTE: on 2-TC chips (v7x) "parallel" lets the runtime shard the batch
        # axis; if a trace shows it staying on one core, switch this axis to
        # pltpu.CORE_PARALLEL.
        compiler_params=pltpu.CompilerParams(
            dimension_semantics=("parallel",),
            vmem_limit_bytes=_VMEM_LIMIT,
        ),
        cost_estimate=cost,
    )(x3, w1, w2)


# ---------------------------------------------------------------------------
# Two-pass fallback for per-batch slabs that exceed the block budget:
#   pass 1: spatially tiled pool -> excite MLP -> sigmoid gate (f32, (B,1,C))
#   pass 2: spatially tiled elementwise rescale.
# ---------------------------------------------------------------------------

def _se_gate_kernel(x_ref, w1_ref, w2_ref, gate_ref, *, inv_hw, hw, ts):
    # x_ref: (TB, C, TS) spatial tile.  gate_ref: (TB, 1, C) f32, resident
    # across the spatial grid axis (accumulator, then the sigmoid gate).
    s_idx = pl.program_id(1)

    @pl.when(s_idx == 0)
    def _init():
        gate_ref[...] = jnp.zeros_like(gate_ref)

    x = x_ref[...]
    # Mask lanes past the true spatial extent (ragged last tile reads garbage).
    valid = hw - s_idx * ts
    lane = lax.broadcasted_iota(jnp.int32, x.shape, 2)
    xm = jnp.where(lane < valid, x, jnp.zeros_like(x))
    gate_ref[...] += jnp.sum(xm, axis=2, dtype=jnp.float32)[:, None, :]

    @pl.when(s_idx == pl.num_programs(1) - 1)
    def _finalize():
        y = gate_ref[...][:, 0, :] * inv_hw                          # (TB, C)
        h = jnp.maximum(
            jnp.dot(y, w1_ref[...], preferred_element_type=jnp.float32), 0.0)
        s = jax.nn.sigmoid(
            jnp.dot(h, w2_ref[...], preferred_element_type=jnp.float32))
        gate_ref[...] = s[:, None, :]


def _se_scale_kernel(x_ref, gate_ref, o_ref):
    gate = gate_ref[...][:, 0, :][:, :, None]                        # (TB, C, 1)
    o_ref[...] = x_ref[...] * gate.astype(o_ref.dtype)


def _se_block_two_pass(x3, w1_t, w2_t, *, inv_hw, block_budget):
    B, C, HW = x3.shape
    Cr = w1_t.shape[1]
    itemsize = jnp.dtype(x3.dtype).itemsize

    # Spatial tile: lane-aligned (multiple of 128) and sized to the budget.
    if HW <= 128:
        ts = HW
    else:
        ts = max(128, (block_budget // max(1, C * itemsize)) // 128 * 128)
        ts = min(ts, max(128, (HW // 128) * 128))
    ns = pl.cdiv(HW, ts)
    tb = 1
    grid = (pl.cdiv(B, tb), ns)

    gate = pl.pallas_call(
        functools.partial(_se_gate_kernel, inv_hw=inv_hw, hw=HW, ts=ts),
        out_shape=jax.ShapeDtypeStruct((B, 1, C), jnp.float32),
        grid_spec=pltpu.PrefetchScalarGridSpec(
            num_scalar_prefetch=0,
            grid=grid,
            in_specs=[
                pl.BlockSpec((tb, C, ts), lambda b, s: (b, 0, s)),
                pl.BlockSpec(w1_t.shape, lambda b, s: (0, 0)),
                pl.BlockSpec(w2_t.shape, lambda b, s: (0, 0)),
            ],
            out_specs=pl.BlockSpec((tb, 1, C), lambda b, s: (b, 0, 0)),
        ),
        compiler_params=pltpu.CompilerParams(
            dimension_semantics=("parallel", "arbitrary"),
            vmem_limit_bytes=_VMEM_LIMIT,
        ),
        cost_estimate=pl.CostEstimate(
            flops=int(4 * B * C * Cr + 2 * B * C * HW),
            transcendentals=int(B * C),
            bytes_accessed=int(B * C * HW * itemsize + B * C * 4),
        ),
    )(x3, w1_t, w2_t)

    out = pl.pallas_call(
        _se_scale_kernel,
        out_shape=jax.ShapeDtypeStruct(x3.shape, x3.dtype),
        grid_spec=pltpu.PrefetchScalarGridSpec(
            num_scalar_prefetch=0,
            grid=grid,
            in_specs=[
                pl.BlockSpec((tb, C, ts), lambda b, s: (b, 0, s)),
                pl.BlockSpec((tb, 1, C), lambda b, s: (b, 0, 0)),
            ],
            out_specs=pl.BlockSpec((tb, C, ts), lambda b, s: (b, 0, s)),
        ),
        compiler_params=pltpu.CompilerParams(
            dimension_semantics=("parallel", "parallel"),
            vmem_limit_bytes=_VMEM_LIMIT,
        ),
        cost_estimate=pl.CostEstimate(
            flops=int(B * C * HW),
            transcendentals=0,
            bytes_accessed=int(2 * B * C * HW * itemsize + B * C * 4),
        ),
    )(x3, gate)
    return out


# ---------------------------------------------------------------------------
# Public wrapper.
# ---------------------------------------------------------------------------

def se_block(x_nchw, w1_t, w2_t, *, block_budget_bytes=_BLOCK_BUDGET):
    """SEBlock forward.

    x_nchw: [B, C, H, W].  w1_t: [C, C//r], w2_t: [C//r, C] — the two
    nn.Linear(bias=False) weights pre-transposed to the `y @ W` form
    (i.e. fc1.weight.T, fc2.weight.T).
    """
    B, C, H, W = x_nchw.shape
    HW = H * W
    Cr = w1_t.shape[1]
    itemsize = jnp.dtype(x_nchw.dtype).itemsize
    inv_hw = 1.0 / float(HW)
    per_batch_bytes = C * HW * itemsize

    if per_batch_bytes > block_budget_bytes:
        out = _se_block_two_pass(x_nchw.reshape(B, C, HW), w1_t, w2_t,
                                 inv_hw=inv_hw, block_budget=block_budget_bytes)
        return out.reshape(B, C, H, W)

    cost = pl.CostEstimate(
        flops=int(4 * B * C * Cr + 3 * B * C * HW),
        transcendentals=int(B * C),
        bytes_accessed=int(2 * B * C * HW * itemsize + 2 * C * Cr * 4),
    )

    # Lane-dense grouping: (B, C, HW) -> (B, C/g, g*HW) with g*HW == 128 when
    # HW is a divisor of 128 (free contiguous reshape, no extra HBM traffic).
    g = 128 // HW if (HW < 128 and 128 % HW == 0) else 1
    grouped = 1 < g <= 32 and C % g == 0
    # TODO(synk): HW values that neither divide nor are multiples of 128 (e.g.
    # 7x7=49, 14x14=196) still take the plain path with partially-masked lane
    # stores.

    if grouped:
        Cg = C // g
        x3 = x_nchw.reshape(B, Cg, g * HW)
        # Per-lane-group weight panels (channel c = cg*g + k): tiny one-time
        # wrapper-side rearrangement of the weights.
        w1_p = w1_t.reshape(Cg, g, Cr).transpose(1, 0, 2)            # (g, Cg, Cr)
        w2_p = w2_t.reshape(Cr, Cg, g).transpose(2, 0, 1)            # (g, Cr, Cg)
        kernel = functools.partial(_se_kernel_grouped, inv_hw=inv_hw, hw=HW, g=g)
        out = _se_fused(kernel, x3, w1_p, w2_p, cost)
    else:
        x3 = x_nchw.reshape(B, C, HW)
        kernel = functools.partial(_se_kernel_plain, inv_hw=inv_hw)
        out = _se_fused(kernel, x3, w1_t, w2_t, cost)
    return out.reshape(B, C, H, W)


def se_block_ref(x, w1_t, w2_t):
    """Pure-JAX reference mirroring the PyTorch forward (bias-free Linears)."""
    y = jnp.mean(x.astype(jnp.float32), axis=(2, 3))                 # (B, C)
    h = jnp.maximum(y @ w1_t.astype(jnp.float32), 0.0)
    s = jax.nn.sigmoid(h @ w2_t.astype(jnp.float32))
    return (x.astype(jnp.float32) * s[:, :, None, None]).astype(x.dtype)


def _run_case(key, B, C, H, W, reduction, **kwargs):
    Cr = max(1, C // reduction)
    kx, k1, k2 = jax.random.split(key, 3)
    x = jax.random.normal(kx, (B, C, H, W), dtype=jnp.float32)
    w1_t = jax.random.normal(k1, (C, Cr), dtype=jnp.float32) * 0.1   # fc1.weight.T
    w2_t = jax.random.normal(k2, (Cr, C), dtype=jnp.float32) * 0.1   # fc2.weight.T
    out = jax.block_until_ready(se_block(x, w1_t, w2_t, **kwargs))
    ref = se_block_ref(x, w1_t, w2_t)
    assert out.shape == x.shape
    assert jnp.allclose(out, ref, atol=1e-4, rtol=1e-4), (
        f"mismatch: max abs err {jnp.max(jnp.abs(out - ref))}")
    return out


if __name__ == "__main__":
    key = jax.random.PRNGKey(0)
    k1, k2, k3 = jax.random.split(key, 3)

    # 1) Main case: HW = 64 -> lane-dense grouped path (g = 2).
    _run_case(k1, B=4, C=64, H=8, W=8, reduction=16)

    # 2) Plain path (HW = 144 is neither a divisor nor a multiple of 128).
    _run_case(k2, B=2, C=16, H=12, W=12, reduction=4)

    # 3) Spatially tiled 2-pass fallback, forced with a tiny block budget
    #    (exercises the resident accumulator + ragged spatial tile masking).
    _run_case(k3, B=2, C=32, H=16, W=20, reduction=8,
              block_budget_bytes=32 * 1024)

    print("KERNEL_OK")
</pallas_src>

<mosaic_0001>
module attributes {stable_mosaic.version = 11 : i64} {
  func.func @_se_kernel_grouped(%arg0: i32, %arg1: memref<4x32x128xf32, #tpu.memory_space<vmem>>, %arg2: memref<2x32x4xf32, #tpu.memory_space<vmem>>, %arg3: memref<2x4x32xf32, #tpu.memory_space<vmem>>, %arg4: memref<4x32x128xf32, #tpu.memory_space<vmem>>) attributes {dimension_semantics = [#tpu.dimension_semantics<parallel>], iteration_bounds = array<i64: 1>, scalar_prefetch = 0 : i64, scratch_operands = 0 : i64, tpu.core_type = #tpu.core_type<tc>, window_params = [{transform_indices = @transform_0, window_bounds = array<i64: 4, 32, 128>}, {pipeline_mode = #tpu.pipeline_mode<synchronous>, transform_indices = @transform_1, window_bounds = array<i64: 2, 32, 4>}, {pipeline_mode = #tpu.pipeline_mode<synchronous>, transform_indices = @transform_2, window_bounds = array<i64: 2, 4, 32>}, {transform_indices = @transform_3, window_bounds = array<i64: 4, 32, 128>}]} {
    %c0 = arith.constant 0 : index
    %c0_0 = arith.constant 0 : index
    %c0_1 = arith.constant 0 : index
    %0 = vector.load %arg1[%c0, %c0_0, %c0_1] : memref<4x32x128xf32, #tpu.memory_space<vmem>>, vector<4x32x128xf32>
    %1 = vector.extract_strided_slice %0 {offsets = [0, 0, 0], sizes = [4, 32, 64], strides = [1, 1, 1]} : vector<4x32x128xf32> to vector<4x32x64xf32>
    %2 = vector.extract_strided_slice %0 {offsets = [0, 0, 64], sizes = [4, 32, 64], strides = [1, 1, 1]} : vector<4x32x128xf32> to vector<4x32x64xf32>
    %cst = arith.constant dense<0.000000e+00> : vector<4x32xf32>
    %3 = vector.multi_reduction <add>, %1, %cst [2] : vector<4x32x64xf32> to vector<4x32xf32>
    %cst_2 = arith.constant 1.562500e-02 : f32
    %4 = vector.broadcast %cst_2 : f32 to vector<4x32xf32>
    %5 = arith.mulf %3, %4 : vector<4x32xf32>
    %c0_3 = arith.constant 0 : index
    %c0_4 = arith.constant 0 : index
    %c0_5 = arith.constant 0 : index
    %6 = vector.load %arg2[%c0_3, %c0_4, %c0_5] : memref<2x32x4xf32, #tpu.memory_space<vmem>>, vector<1x32x4xf32>
    %7 = vector.shape_cast %6 : vector<1x32x4xf32> to vector<32x4xf32>
    %cst_6 = arith.constant dense<0.000000e+00> : vector<4x4xf32>
    %8 = tpu.matmul %5, %7, %cst_6 {dimension_numbers = #tpu.dot_dimension_numbers<[1], [0], [0], [1], [0, 0, 1, 1], [], []>} : vector<4x32xf32>, vector<32x4xf32>, vector<4x4xf32> -> vector<4x4xf32>
    %cst_7 = arith.constant dense<0.000000e+00> : vector<4x32xf32>
    %9 = vector.multi_reduction <add>, %2, %cst_7 [2] : vector<4x32x64xf32> to vector<4x32xf32>
    %cst_8 = arith.constant 1.562500e-02 : f32
    %10 = vector.broadcast %cst_8 : f32 to vector<4x32xf32>
    %11 = arith.mulf %9, %10 : vector<4x32xf32>
    %c1 = arith.constant 1 : index
    %c0_9 = arith.constant 0 : index
    %c0_10 = arith.constant 0 : index
    %12 = vector.load %arg2[%c1, %c0_9, %c0_10] : memref<2x32x4xf32, #tpu.memory_space<vmem>>, vector<1x32x4xf32>
    %13 = vector.shape_cast %12 : vector<1x32x4xf32> to vector<32x4xf32>
    %cst_11 = arith.constant dense<0.000000e+00> : vector<4x4xf32>
    %14 = tpu.matmul %11, %13, %cst_11 {dimension_numbers = #tpu.dot_dimension_numbers<[1], [0], [0], [1], [0, 0, 1, 1], [], []>} : vector<4x32xf32>, vector<32x4xf32>, vector<4x4xf32> -> vector<4x4xf32>
    %15 = arith.addf %8, %14 : vector<4x4xf32>
    %cst_12 = arith.constant 0.000000e+00 : f32
    %16 = vector.broadcast %cst_12 : f32 to vector<4x4xf32>
    %17 = arith.maximumf %15, %16 : vector<4x4xf32>
    %c0_13 = arith.constant 0 : index
    %c0_14 = arith.constant 0 : index
    %c0_15 = arith.constant 0 : index
    %18 = vector.load %arg3[%c0_13, %c0_14, %c0_15] : memref<2x4x32xf32, #tpu.memory_space<vmem>>, vector<1x4x32xf32>
    %19 = vector.shape_cast %18 : vector<1x4x32xf32> to vector<4x32xf32>
    %cst_16 = arith.constant dense<0.000000e+00> : vector<4x32xf32>
    %20 = tpu.matmul %17, %19, %cst_16 {dimension_numbers = #tpu.dot_dimension_numbers<[1], [0], [0], [1], [0, 0, 1, 1], [], []>} : vector<4x4xf32>, vector<4x32xf32>, vector<4x32xf32> -> vector<4x32xf32>
    %21 = arith.negf %20 : vector<4x32xf32>
    %22 = math.exp %21 : vector<4x32xf32>
    %cst_17 = arith.constant 1.000000e+00 : f32
    %23 = vector.broadcast %cst_17 : f32 to vector<4x32xf32>
    %24 = arith.addf %23, %22 : vector<4x32xf32>
    %25 = arith.divf %23, %24 : vector<4x32xf32>
    %26 = vector.shape_cast %25 : vector<4x32xf32> to vector<4x32x1xf32>
    %27 = vector.broadcast %26 : vector<4x32x1xf32> to vector<4x32x64xf32>
    %28 = arith.mulf %1, %27 : vector<4x32x64xf32>
    %c1_18 = arith.constant 1 : index
    %c0_19 = arith.constant 0 : index
    %c0_20 = arith.constant 0 : index
    %29 = vector.load %arg3[%c1_18, %c0_19, %c0_20] : memref<2x4x32xf32, #tpu.memory_space<vmem>>, vector<1x4x32xf32>
    %30 = vector.shape_cast %29 : vector<1x4x32xf32> to vector<4x32xf32>
    %cst_21 = arith.constant dense<0.000000e+00> : vector<4x32xf32>
    %31 = tpu.matmul %17, %30, %cst_21 {dimension_numbers = #tpu.dot_dimension_numbers<[1], [0], [0], [1], [0, 0, 1, 1], [], []>} : vector<4x4xf32>, vector<4x32xf32>, vector<4x32xf32> -> vector<4x32xf32>
    %32 = arith.negf %31 : vector<4x32xf32>
    %33 = math.exp %32 : vector<4x32xf32>
    %cst_22 = arith.constant 1.000000e+00 : f32
    %34 = vector.broadcast %cst_22 : f32 to vector<4x32xf32>
    %35 = arith.addf %34, %33 : vector<4x32xf32>
    %36 = arith.divf %34, %35 : vector<4x32xf32>
    %37 = vector.shape_cast %36 : vector<4x32xf32> to vector<4x32x1xf32>
    %38 = vector.broadcast %37 : vector<4x32x1xf32> to vector<4x32x64xf32>
    %39 = arith.mulf %2, %38 : vector<4x32x64xf32>
    %40 = tpu.concatenate %28, %39 in 2 : vector<4x32x64xf32>, vector<4x32x64xf32> -> vector<4x32x128xf32>
    %c0_23 = arith.constant 0 : index
    %c0_24 = arith.constant 0 : index
    %c0_25 = arith.constant 0 : index
    %41 = vector.load %arg4[%c0_23, %c0_24, %c0_25] : memref<4x32x128xf32, #tpu.memory_space<vmem>>, vector<4x32x128xf32>
    tpu.vector_store %arg4[%c0_23, %c0_24, %c0_25], %40 {strides = array<i32>} : memref<4x32x128xf32, #tpu.memory_space<vmem>>, vector<4x32x128xf32>,
    return
  }
  func.func @transform_0(%arg0: i32) -> (i32, i32, i32) {
    %c0_i32 = arith.constant 0 : i32
    %c0_i32_0 = arith.constant 0 : i32
    %c0_i32_1 = arith.constant 0 : i32
    return %arg0, %c0_i32, %c0_i32_0 : i32, i32, i32
  }
  func.func @transform_1(%arg0: i32) -> (i32, i32, i32) {
    %c0_i32 = arith.constant 0 : i32
    %c0_i32_0 = arith.constant 0 : i32
    %c0_i32_1 = arith.constant 0 : i32
    %c0_i32_2 = arith.constant 0 : i32
    return %c0_i32, %c0_i32_0, %c0_i32_1 : i32, i32, i32
  }
  func.func @transform_2(%arg0: i32) -> (i32, i32, i32) {
    %c0_i32 = arith.constant 0 : i32
    %c0_i32_0 = arith.constant 0 : i32
    %c0_i32_1 = arith.constant 0 : i32
    %c0_i32_2 = arith.constant 0 : i32
    return %c0_i32, %c0_i32_0, %c0_i32_1 : i32, i32, i32
  }
  func.func @transform_3(%arg0: i32) -> (i32, i32, i32) {
    %c0_i32 = arith.constant 0 : i32
    %c0_i32_0 = arith.constant 0 : i32
    %c0_i32_1 = arith.constant 0 : i32
    return %arg0, %c0_i32, %c0_i32_0 : i32, i32, i32
  }
}

</mosaic_0001>

<llo_original>
// kernel: tpu_custom_call.1
$region0: #{tpu_custom_call.1}
  #allocation0 [shape = 'u32[]', space=smem, size = 0x4, offset = 0x4, fixed_abs, tag = 'smem constant byte address 0x4 - core index']
  #allocation1 [shape = 'u32[72,128]{1,0:T(1,128)}', space=vmem, size = 0x9000, scoped, tag = 'internal scratch']
  %s0 = inlined_call_operand.hbm [shape: f32[4,32,128], index: 0, kind: input, shape index: {}]
  %s1 = inlined_call_operand.vmem [shape: f32[2,32,4], index: 1, kind: input, shape index: {}]
  %s2 = inlined_call_operand.vmem [shape: f32[2,4,32], index: 2, kind: input, shape index: {}]
  %s3 = inlined_call_operand.hbm [shape: f32[4,32,128], index: 3, kind: output, shape index: {}]
  %s4 = sld [smem:[#allocation0]]
  $region26: #{tpu_custom_call.1} parent=0
    _
  %s6 = ssub.s32 1, %s4
  %s7 = scalar_select 0, %s6, %s4
  $region1: #{tpu_custom_call.1} parent=0
    #allocation2 [shape = 'u8[65536]{0}', space=vmem, size = 0x10000, scoped, tag = 'input window, operand 0, single buffered']
    #allocation3 [shape = 's32[1]{0}', space=sflag, size = 0x4, scoped, tag = 'scoped memory for tpu_custom_call.1']
    #allocation4 [shape = 's32[1]{0}', space=sflag, size = 0x4, scoped, tag = 'scoped memory for tpu_custom_call.1']
    #allocation5 [shape = 'u8[65536]{0}', space=vmem, size = 0x10000, scoped, tag = 'output window, operand 0, single buffered']
    %8 = vsyncpa [#allocation3], 0
    %9 = vsyncpa [#allocation4], 0
    // Predicated region
    $region2: #{tpu_custom_call.1} parent=1 // pred_check
      _
    $region3: #{tpu_custom_call.1} parent=1 // pred_check_branch
      %11 = sbr.rel (0) target = $region5
    $region4: #{tpu_custom_call.1} parent=1 // pred_region
      %13 = vsyncadd [#allocation3], 0
      %s14 = sshll.u32 %s0, 4
      %s15 = int_to_ptr.hbm [resolvable:$true] %s14
      %s16 = sshll.u32 [#allocation2], 4
      %s17 = int_to_ptr.vmem [resolvable:$true] %s16
      %22 = dma.hbm_to_vmem [thread:$0]  %s15, 2048, %s17, [#allocation3], 128, 128, 8
    $region5: #{tpu_custom_call.1} parent=1 // pred_fallthru
      _
    // Predicated region
    $region6: #{tpu_custom_call.1} parent=1 // pred_check
      _
    $region7: #{tpu_custom_call.1} parent=1 // pred_check_branch
      %24 = sbr.rel (0) target = $region9
    $region8: #{tpu_custom_call.1} parent=1 // pred_region
      _
    $region9: #{tpu_custom_call.1} parent=1 // pred_fallthru
      _
    // Predicated region
    $region10: #{tpu_custom_call.1} parent=1 // pred_check
      _
    $region11: #{tpu_custom_call.1} parent=1 // pred_check_branch
      %26 = sbr.rel (0) target = $region13
    $region12: #{tpu_custom_call.1} parent=1 // pred_region
      _
    $region13: #{tpu_custom_call.1} parent=1 // pred_fallthru
      _
    // Predicated region
    $region14: #{tpu_custom_call.1} parent=1 // pred_check
      _
    $region15: #{tpu_custom_call.1} parent=1 // pred_check_branch
      %28 = sbr.rel (0) target = $region17
    $region16: #{tpu_custom_call.1} parent=1 // pred_region
      %30 = dma.done [#allocation3], 2048
    $region17: #{tpu_custom_call.1} parent=1 // pred_fallthru
      _
    %v31 = vld [vmem:[#allocation2] sm:$0xff]
    %v32 = vld [vmem:[#allocation2 + $0x8] sm:$0xff]
    %v33 = vld [vmem:[#allocation2 + $0x10] sm:$0xff]
    %v34 = vld [vmem:[#allocation2 + $0x18] sm:$0xff]
    %v35 = vld [vmem:[#allocation2 + $0x20] sm:$0xff]
    %v36 = vld [vmem:[#allocation2 + $0x28] sm:$0xff]
    %v37 = vld [vmem:[#allocation2 + $0x30] sm:$0xff]
    %v38 = vld [vmem:[#allocation2 + $0x38] sm:$0xff]
    %v39 = vld [vmem:[#allocation2 + $0x40] sm:$0xff]
    %v40 = vld [vmem:[#allocation2 + $0x48] sm:$0xff]
    %v41 = vld [vmem:[#allocation2 + $0x50] sm:$0xff]
    %v42 = vld [vmem:[#allocation2 + $0x58] sm:$0xff]
    %v43 = vld [vmem:[#allocation2 + $0x60] sm:$0xff]
    %v44 = vld [vmem:[#allocation2 + $0x68] sm:$0xff]
    %v45 = vld [vmem:[#allocation2 + $0x70] sm:$0xff]
    %v46 = vld [vmem:[#allocation2 + $0x78] sm:$0xff]
    %vm47 = vcmask 523264
    %v48 = vsel %vm47, %v31, 0.0
    %49 = vadd.xlane.f32.xlu0 %v48
    %v50 = vpop.xlane.xlu0 %49
    %v51 = vsel %vm47, %v32, 0.0
    %52 = vadd.xlane.f32.xlu0 %v51
    %v53 = vpop.xlane.xlu0 %52
    %v54 = vsel %vm47, %v33, 0.0
    %55 = vadd.xlane.f32.xlu0 %v54
    %v56 = vpop.xlane.xlu0 %55
    %v57 = vsel %vm47, %v34, 0.0
    %58 = vadd.xlane.f32.xlu0 %v57
    %v59 = vpop.xlane.xlu0 %58
    %v60 = vsel %vm47, %v35, 0.0
    %61 = vadd.xlane.f32.xlu0 %v60
    %v62 = vpop.xlane.xlu0 %61
    %v63 = vsel %vm47, %v36, 0.0
    %64 = vadd.xlane.f32.xlu0 %v63
    %v65 = vpop.xlane.xlu0 %64
    %v66 = vsel %vm47, %v37, 0.0
    %67 = vadd.xlane.f32.xlu0 %v66
    %v68 = vpop.xlane.xlu0 %67
    %v69 = vsel %vm47, %v38, 0.0
    %70 = vadd.xlane.f32.xlu0 %v69
    %v71 = vpop.xlane.xlu0 %70
    %v72 = vsel %vm47, %v39, 0.0
    %73 = vadd.xlane.f32.xlu0 %v72
    %v74 = vpop.xlane.xlu0 %73
    %v75 = vsel %vm47, %v40, 0.0
    %76 = vadd.xlane.f32.xlu0 %v75
    %v77 = vpop.xlane.xlu0 %76
    %v78 = vsel %vm47, %v41, 0.0
    %79 = vadd.xlane.f32.xlu0 %v78
    %v80 = vpop.xlane.xlu0 %79
    %v81 = vsel %vm47, %v42, 0.0
    %82 = vadd.xlane.f32.xlu0 %v81
    %v83 = vpop.xlane.xlu0 %82
    %v84 = vsel %vm47, %v43, 0.0
    %85 = vadd.xlane.f32.xlu0 %v84
    %v86 = vpop.xlane.xlu0 %85
    %v87 = vsel %vm47, %v44, 0.0
    %88 = vadd.xlane.f32.xlu0 %v87
    %v89 = vpop.xlane.xlu0 %88
    %v90 = vsel %vm47, %v45, 0.0
    %91 = vadd.xlane.f32.xlu0 %v90
    %v92 = vpop.xlane.xlu0 %91
    %v93 = vsel %vm47, %v46, 0.0
    %94 = vadd.xlane.f32.xlu0 %v93
    %v95 = vpop.xlane.xlu0 %94
    %v96 = vmul.f32 %v50, 0.015625
    %v97 = vmul.f32 %v53, 0.015625
    %v98 = vmul.f32 %v56, 0.015625
    %v99 = vmul.f32 %v59, 0.015625
    %v100 = vmul.f32 %v62, 0.015625
    %v101 = vmul.f32 %v65, 0.015625
    %v102 = vmul.f32 %v68, 0.015625
    %v103 = vmul.f32 %v71, 0.015625
    %v104 = vmul.f32 %v74, 0.015625
    %v105 = vmul.f32 %v77, 0.015625
    %v106 = vmul.f32 %v80, 0.015625
    %v107 = vmul.f32 %v83, 0.015625
    %v108 = vmul.f32 %v86, 0.015625
    %v109 = vmul.f32 %v89, 0.015625
    %v110 = vmul.f32 %v92, 0.015625
    %v111 = vmul.f32 %v95, 0.015625
    %v112 = vld [vmem:[%s1] sm:$0xff]
    %v113 = vld [vmem:[%s1 + $0x8] sm:$0xff]
    %v114 = vld [vmem:[%s1 + $0x10] sm:$0xff]
    %v115 = vld [vmem:[%s1 + $0x18] sm:$0xff]
    %132 = vrot.lane.b32.xlu0 %v31, 64
    %v133 = vpop.permute.xlu0 %132
    %134 = vrot.lane.b32.xlu0 %v32, 64
    %v135 = vpop.permute.xlu0 %134
    %136 = vrot.lane.b32.xlu0 %v33, 64
    %v137 = vpop.permute.xlu0 %136
    %138 = vrot.lane.b32.xlu0 %v34, 64
    %v139 = vpop.permute.xlu0 %138
    %140 = vrot.lane.b32.xlu0 %v35, 64
    %v141 = vpop.permute.xlu0 %140
    %142 = vrot.lane.b32.xlu0 %v36, 64
    %v143 = vpop.permute.xlu0 %142
    %144 = vrot.lane.b32.xlu0 %v37, 64
    %v145 = vpop.permute.xlu0 %144
    %146 = vrot.lane.b32.xlu0 %v38, 64
    %v147 = vpop.permute.xlu0 %146
    %148 = vrot.lane.b32.xlu0 %v39, 64
    %v149 = vpop.permute.xlu0 %148
    %150 = vrot.lane.b32.xlu0 %v40, 64
    %v151 = vpop.permute.xlu0 %150
    %152 = vrot.lane.b32.xlu0 %v41, 64
    %v153 = vpop.permute.xlu0 %152
    %154 = vrot.lane.b32.xlu0 %v42, 64
    %v155 = vpop.permute.xlu0 %154
    %156 = vrot.lane.b32.xlu0 %v43, 64
    %v157 = vpop.permute.xlu0 %156
    %158 = vrot.lane.b32.xlu0 %v44, 64
    %v159 = vpop.permute.xlu0 %158
    %160 = vrot.lane.b32.xlu0 %v45, 64
    %v161 = vpop.permute.xlu0 %160
    %162 = vrot.lane.b32.xlu0 %v46, 64
    %v163 = vpop.permute.xlu0 %162
    %v180 = vsel %vm47, %v133, 0.0
    %181 = vadd.xlane.f32.xlu0 %v180
    %v182 = vpop.xlane.xlu0 %181
    %v183 = vsel %vm47, %v135, 0.0
    %184 = vadd.xlane.f32.xlu0 %v183
    %v185 = vpop.xlane.xlu0 %184
    %v186 = vsel %vm47, %v137, 0.0
    %187 = vadd.xlane.f32.xlu0 %v186
    %v188 = vpop.xlane.xlu0 %187
    %v189 = vsel %vm47, %v139, 0.0
    %190 = vadd.xlane.f32.xlu0 %v189
    %v191 = vpop.xlane.xlu0 %190
    %v192 = vsel %vm47, %v141, 0.0
    %193 = vadd.xlane.f32.xlu0 %v192
    %v194 = vpop.xlane.xlu0 %193
    %v195 = vsel %vm47, %v143, 0.0
    %196 = vadd.xlane.f32.xlu0 %v195
    %v197 = vpop.xlane.xlu0 %196
    %v198 = vsel %vm47, %v145, 0.0
    %199 = vadd.xlane.f32.xlu0 %v198
    %v200 = vpop.xlane.xlu0 %199
    %v201 = vsel %vm47, %v147, 0.0
    %202 = vadd.xlane.f32.xlu0 %v201
    %v203 = vpop.xlane.xlu0 %202
    %v204 = vsel %vm47, %v149, 0.0
    %205 = vadd.xlane.f32.xlu0 %v204
    %v206 = vpop.xlane.xlu0 %205
    %v207 = vsel %vm47, %v151, 0.0
    %208 = vadd.xlane.f32.xlu0 %v207
    %v209 = vpop.xlane.xlu0 %208
    %v210 = vsel %vm47, %v153, 0.0
    %211 = vadd.xlane.f32.xlu0 %v210
    %v212 = vpop.xlane.xlu0 %211
    %v213 = vsel %vm47, %v155, 0.0
    %214 = vadd.xlane.f32.xlu0 %v213
    %v215 = vpop.xlane.xlu0 %214
    %v216 = vsel %vm47, %v157, 0.0
    %217 = vadd.xlane.f32.xlu0 %v216
    %v218 = vpop.xlane.xlu0 %217
    %v219 = vsel %vm47, %v159, 0.0
    %220 = vadd.xlane.f32.xlu0 %v219
    %v221 = vpop.xlane.xlu0 %220
    %v222 = vsel %vm47, %v161, 0.0
    %223 = vadd.xlane.f32.xlu0 %v222
    %v224 = vpop.xlane.xlu0 %223
    %v225 = vsel %vm47, %v163, 0.0
    %226 = vadd.xlane.f32.xlu0 %v225
    %v227 = vpop.xlane.xlu0 %226
    %v228 = vmul.f32 %v182, 0.015625
    %v229 = vmul.f32 %v185, 0.015625
    %v230 = vmul.f32 %v188, 0.015625
    %v231 = vmul.f32 %v191, 0.015625
    %v232 = vmul.f32 %v194, 0.015625
    %v233 = vmul.f32 %v197, 0.015625
    %v234 = vmul.f32 %v200, 0.015625
    %v235 = vmul.f32 %v203, 0.015625
    %v236 = vmul.f32 %v206, 0.015625
    %v237 = vmul.f32 %v209, 0.015625
    %v238 = vmul.f32 %v212, 0.015625
    %v239 = vmul.f32 %v215, 0.015625
    %v240 = vmul.f32 %v218, 0.015625
    %v241 = vmul.f32 %v221, 0.015625
    %v242 = vmul.f32 %v224, 0.015625
    %v243 = vmul.f32 %v227, 0.015625
    %s244 = scalar_lea.vmem %s1, 32
    %v245 = vld [vmem:[%s244] sm:$0xff]
    %v246 = vld [vmem:[%s244 + $0x8] sm:$0xff]
    %v247 = vld [vmem:[%s244 + $0x10] sm:$0xff]
    %v248 = vld [vmem:[%s244 + $0x18] sm:$0xff]
    %v265 = vlaneseq
    %v266 = vand.u32 %v265, 127
    %v267 = vperm.slane %v228, %v266
    %v268 = vadd.s32 %v266, 4294967288
    %v269 = vperm.slane %v229, %v268
    %vm270 = vcmask 130112
    %v271 = vsel %vm270, %v269, %v267
    %v272 = vadd.s32 %v266, 4294967280
    %v273 = vperm.slane %v230, %v272
    %vm274 = vcmask 195712
    %v275 = vsel %vm274, %v273, %v271
    %v276 = vadd.s32 %v266, 4294967272
    %v277 = vperm.slane %v231, %v276
    %vm278 = vcmask 261312
    %v279 = vsel %vm278, %v277, %v275
    %v280 = vperm.slane %v232, %v266
    %v281 = vperm.slane %v233, %v268
    %v282 = vsel %vm270, %v281, %v280
    %v283 = vperm.slane %v234, %v272
    %v284 = vsel %vm274, %v283, %v282
    %v285 = vperm.slane %v235, %v276
    %v286 = vsel %vm278, %v285, %v284
    %v287 = vperm.slane %v236, %v266
    %v288 = vperm.slane %v237, %v268
    %v289 = vsel %vm270, %v288, %v287
    %v290 = vperm.slane %v238, %v272
    %v291 = vsel %vm274, %v290, %v289
    %v292 = vperm.slane %v239, %v276
    %v293 = vsel %vm278, %v292, %v291
    %v294 = vperm.slane %v240, %v266
    %v295 = vperm.slane %v241, %v268
    %v296 = vsel %vm270, %v295, %v294
    %v297 = vperm.slane %v242, %v272
    %v298 = vsel %vm274, %v297, %v296
    %v299 = vperm.slane %v243, %v276
    %v300 = vsel %vm278, %v299, %v298
    %vm301 = vcmask 1041409
    %v302 = vsel %vm301, %v286, %v279
    %vm303 = vcmask 1042434
    %v304 = vsel %vm303, %v293, %v302
    %vm305 = vcmask 1043459
    %v306 = vsel %vm305, %v300, %v304
    %vm307 = vcmask 261120
    %v308 = vsel %vm307, %v306, 0
    %310 = vmatpush.msra.mxu0 0.0
    %311 = vmatpush.msra.mxu0 0.0
    %312 = vmatpush.msra.mxu0 0.0
    %313 = vmatpush.msra.mxu0 0.0
    %314 = vmatpush.msra.mxu0 0.0
    %315 = vmatpush.msra.mxu0 0.0
    %316 = vmatpush.msra.mxu0 0.0
    %317 = vmatpush.msra.mxu0 0.0
    %318 = vmatpush.msra.mxu0 0.0
    %319 = vmatpush.msra.mxu0 0.0
    %320 = vmatpush.msra.mxu0 0.0
    %321 = vmatpush.msra.mxu0 0.0
    %322 = vmatpush.msra.mxu0 %v248
    %323 = vmatpush.msra.mxu0 %v247
    %324 = vmatpush.msra.mxu0 %v246
    %325 = vmatpush.msra.mxu0 %v245
    %326 = vmatmul.f32.gmra.mxu0 %v308
    %v327 = vpop.f32.mrf.mxu0
    %v328 = vadd.f32 0.0, %v327
    %329 = vdwg.mxu0
    %v346 = vperm.slane %v96, %v266
    %v347 = vperm.slane %v97, %v268
    %v348 = vsel %vm270, %v347, %v346
    %v349 = vperm.slane %v98, %v272
    %v350 = vsel %vm274, %v349, %v348
    %v351 = vperm.slane %v99, %v276
    %v352 = vsel %vm278, %v351, %v350
    %v353 = vperm.slane %v100, %v266
    %v354 = vperm.slane %v101, %v268
    %v355 = vsel %vm270, %v354, %v353
    %v356 = vperm.slane %v102, %v272
    %v357 = vsel %vm274, %v356, %v355
    %v358 = vperm.slane %v103, %v276
    %v359 = vsel %vm278, %v358, %v357
    %v360 = vperm.slane %v104, %v266
    %v361 = vperm.slane %v105, %v268
    %v362 = vsel %vm270, %v361, %v360
    %v363 = vperm.slane %v106, %v272
    %v364 = vsel %vm274, %v363, %v362
    %v365 = vperm.slane %v107, %v276
    %v366 = vsel %vm278, %v365, %v364
    %v367 = vperm.slane %v108, %v266
    %v368 = vperm.slane %v109, %v268
    %v369 = vsel %vm270, %v368, %v367
    %v370 = vperm.slane %v110, %v272
    %v371 = vsel %vm274, %v370, %v369
    %v372 = vperm.slane %v111, %v276
    %v373 = vsel %vm278, %v372, %v371
    %v374 = vsel %vm301, %v359, %v352
    %v375 = vsel %vm303, %v366, %v374
    %v376 = vsel %vm305, %v373, %v375
    %v377 = vsel %vm307, %v376, 0
    %379 = vmatpush.msra.mxu0 0.0
    %380 = vmatpush.msra.mxu0 0.0
    %381 = vmatpush.msra.mxu0 0.0
    %382 = vmatpush.msra.mxu0 0.0
    %383 = vmatpush.msra.mxu0 0.0
    %384 = vmatpush.msra.mxu0 0.0
    %385 = vmatpush.msra.mxu0 0.0
    %386 = vmatpush.msra.mxu0 0.0
    %387 = vmatpush.msra.mxu0 0.0
    %388 = vmatpush.msra.mxu0 0.0
    %389 = vmatpush.msra.mxu0 0.0
    %390 = vmatpush.msra.mxu0 0.0
    %391 = vmatpush.msra.mxu0 %v115
    %392 = vmatpush.msra.mxu0 %v114
    %393 = vmatpush.msra.mxu0 %v113
    %394 = vmatpush.msra.mxu0 %v112
    %395 = vmatmul.f32.gmra.mxu0 %v377
    %v396 = vpop.f32.mrf.mxu0
    %v397 = vadd.f32 %v328, %v396
    %398 = vdwg.mxu0
    %v399 = vmax.f32 %v397, 0.0
    %v400 = vld [vmem:[%s2] sm:$0xf]
    %vm401 = vcmask 31744
    %v403 = vsel %vm401, %v399, 0
    %vm405 = vcmask 1043456
    %v407 = vsel %vm405, %v400, 0
    %409 = vmatpush.msra.mxu0 0.0
    %410 = vmatpush.msra.mxu0 0.0
    %411 = vmatpush.msra.mxu0 0.0
    %412 = vmatpush.msra.mxu0 0.0
    %413 = vmatpush.msra.mxu0 0.0
    %414 = vmatpush.msra.mxu0 0.0
    %415 = vmatpush.msra.mxu0 0.0
    %416 = vmatpush.msra.mxu0 0.0
    %417 = vmatpush.msra.mxu0 0.0
    %418 = vmatpush.msra.mxu0 0.0
    %419 = vmatpush.msra.mxu0 0.0
    %420 = vmatpush.msra.mxu0 0.0
    %421 = vmatpush.msra.mxu0 0.0
    %422 = vmatpush.msra.mxu0 0.0
    %423 = vmatpush.msra.mxu0 0.0
    %424 = vmatpush.msra.mxu0 %v407
    %425 = vmatmul.f32.gmra.mxu0 %v403
    %v426 = vpop.f32.mrf.mxu0
    %v427 = vadd.f32 0.0, %v426
    %428 = vdwg.mxu0
    %v429 = vxor.u32 %v427, 2147483648
    %v430 = vmul.f32 %v429, 1.442695
    %v431 = vpow.pop %v430
    %v432 = vadd.f32 %v431, 1.0
    %v433 = vrcp.pop %v432
    %v434 = vmul.f32 %v432, %v433
    %v435 = vsub.f32 1.0, %v434
    %v436 = vmul.f32 %v433, %v435
    %v437 = vadd.f32 %v433, %v436
    %vm438 = vweird.f32 %v432
    %vm439 = vweird.f32 %v433
    %vm440 = vmor %vm438, %vm439
    %v441 = vsel %vm440, %v433, %v437
    %v442 = vand.u32 2147483647, %v432
    %vm443 = vcmp.eq.f32.partialorder %v442, 8.507059e+37
    %v444 = vand.u32 %v432, 2147483648
    %v445 = vor.u32 1.1754944e-38, %v444
    %v446 = vsel %vm443, %v445, %v441
    %v447 = vmul.f32 1.0, %v446
    %v448 = vperm.slane %v447, 0
    %v449 = vlaneseq
    %v450 = vshrl.u32 %v449, 7
    %452 = vset.pattern.permute.xlu0 %v450
    %453 = vperm.xlu0 %452, %v448
    %v454 = vpop.permute.xlu0 %453
    %v455 = vlaneseq
    %v456 = vshrl.u32 %v455, 7
    %v457 = vadd.s32 %v456, 8
    %458 = vset.pattern.permute.xlu0 %v457
    %459 = vperm.xlu0 %458, %v448
    %v460 = vpop.permute.xlu0 %459
    %v461 = vlaneseq
    %v462 = vshrl.u32 %v461, 7
    %v463 = vadd.s32 %v462, 16
    %464 = vset.pattern.permute.xlu0 %v463
    %465 = vperm.xlu0 %464, %v448
    %v466 = vpop.permute.xlu0 %465
    %v467 = vlaneseq
    %v468 = vshrl.u32 %v467, 7
    %v469 = vadd.s32 %v468, 24
    %470 = vset.pattern.permute.xlu0 %v469
    %471 = vperm.xlu0 %470, %v448
    %v472 = vpop.permute.xlu0 %471
    %v473 = vperm.slane %v447, 1
    %v474 = vlaneseq
    %v475 = vshrl.u32 %v474, 7
    %477 = vset.pattern.permute.xlu0 %v475
    %478 = vperm.xlu0 %477, %v473
    %v479 = vpop.permute.xlu0 %478
    %v480 = vlaneseq
    %v481 = vshrl.u32 %v480, 7
    %v482 = vadd.s32 %v481, 8
    %483 = vset.pattern.permute.xlu0 %v482
    %484 = vperm.xlu0 %483, %v473
    %v485 = vpop.permute.xlu0 %484
    %v486 = vlaneseq
    %v487 = vshrl.u32 %v486, 7
    %v488 = vadd.s32 %v487, 16
    %489 = vset.pattern.permute.xlu0 %v488
    %490 = vperm.xlu0 %489, %v473
    %v491 = vpop.permute.xlu0 %490
    %v492 = vlaneseq
    %v493 = vshrl.u32 %v492, 7
    %v494 = vadd.s32 %v493, 24
    %495 = vset.pattern.permute.xlu0 %v494
    %496 = vperm.xlu0 %495, %v473
    %v497 = vpop.permute.xlu0 %496
    %v498 = vperm.slane %v447, 2
    %v499 = vlaneseq
    %v500 = vshrl.u32 %v499, 7
    %502 = vset.pattern.permute.xlu0 %v500
    %503 = vperm.xlu0 %502, %v498
    %v504 = vpop.permute.xlu0 %503
    %v505 = vlaneseq
    %v506 = vshrl.u32 %v505, 7
    %v507 = vadd.s32 %v506, 8
    %508 = vset.pattern.permute.xlu0 %v507
    %509 = vperm.xlu0 %508, %v498
    %v510 = vpop.permute.xlu0 %509
    %v511 = vlaneseq
    %v512 = vshrl.u32 %v511, 7
    %v513 = vadd.s32 %v512, 16
    %514 = vset.pattern.permute.xlu0 %v513
    %515 = vperm.xlu0 %514, %v498
    %v516 = vpop.permute.xlu0 %515
    %v517 = vlaneseq
    %v518 = vshrl.u32 %v517, 7
    %v519 = vadd.s32 %v518, 24
    %520 = vset.pattern.permute.xlu0 %v519
    %521 = vperm.xlu0 %520, %v498
    %v522 = vpop.permute.xlu0 %521
    %v523 = vperm.slane %v447, 3
    %v524 = vlaneseq
    %v525 = vshrl.u32 %v524, 7
    %527 = vset.pattern.permute.xlu0 %v525
    %528 = vperm.xlu0 %527, %v523
    %v529 = vpop.permute.xlu0 %528
    %v530 = vlaneseq
    %v531 = vshrl.u32 %v530, 7
    %v532 = vadd.s32 %v531, 8
    %533 = vset.pattern.permute.xlu0 %v532
    %534 = vperm.xlu0 %533, %v523
    %v535 = vpop.permute.xlu0 %534
    %v536 = vlaneseq
    %v537 = vshrl.u32 %v536, 7
    %v538 = vadd.s32 %v537, 16
    %539 = vset.pattern.permute.xlu0 %v538
    %540 = vperm.xlu0 %539, %v523
    %v541 = vpop.permute.xlu0 %540
    %v542 = vlaneseq
    %v543 = vshrl.u32 %v542, 7
    %v544 = vadd.s32 %v543, 24
    %545 = vset.pattern.permute.xlu0 %v544
    %546 = vperm.xlu0 %545, %v523
    %v547 = vpop.permute.xlu0 %546
    %v548 = vmul.f32 %v31, %v454
    %v549 = vmul.f32 %v32, %v460
    %v550 = vmul.f32 %v33, %v466
    %v551 = vmul.f32 %v34, %v472
    %v552 = vmul.f32 %v35, %v479
    %v553 = vmul.f32 %v36, %v485
    %v554 = vmul.f32 %v37, %v491
    %v555 = vmul.f32 %v38, %v497
    %v556 = vmul.f32 %v39, %v504
    %v557 = vmul.f32 %v40, %v510
    %v558 = vmul.f32 %v41, %v516
    %v559 = vmul.f32 %v42, %v522
    %v560 = vmul.f32 %v43, %v529
    %v561 = vmul.f32 %v44, %v535
    %v562 = vmul.f32 %v45, %v541
    %v563 = vmul.f32 %v46, %v547
    %s564 = scalar_lea.vmem %s2, 4
    %v565 = vld [vmem:[%s564] sm:$0xf]
    %v567 = vsel %vm405, %v565, 0
    %569 = vmatpush.msra.mxu0 0.0
    %570 = vmatpush.msra.mxu0 0.0
    %571 = vmatpush.msra.mxu0 0.0
    %572 = vmatpush.msra.mxu0 0.0
    %573 = vmatpush.msra.mxu0 0.0
    %574 = vmatpush.msra.mxu0 0.0
    %575 = vmatpush.msra.mxu0 0.0
    %576 = vmatpush.msra.mxu0 0.0
    %577 = vmatpush.msra.mxu0 0.0
    %578 = vmatpush.msra.mxu0 0.0
    %579 = vmatpush.msra.mxu0 0.0
    %580 = vmatpush.msra.mxu0 0.0
    %581 = vmatpush.msra.mxu0 0.0
    %582 = vmatpush.msra.mxu0 0.0
    %583 = vmatpush.msra.mxu0 0.0
    %584 = vmatpush.msra.mxu0 %v567
    %585 = vmatmul.f32.gmra.mxu0 %v403
    %v586 = vpop.f32.mrf.mxu0
    %v587 = vadd.f32 0.0, %v586
    %588 = vdwg.mxu0
    %v589 = vxor.u32 %v587, 2147483648
    %v590 = vmul.f32 %v589, 1.442695
    %v591 = vpow.pop %v590
    %v592 = vadd.f32 %v591, 1.0
    %v593 = vrcp.pop %v592
    %v594 = vmul.f32 %v592, %v593
    %v595 = vsub.f32 1.0, %v594
    %v596 = vmul.f32 %v593, %v595
    %v597 = vadd.f32 %v593, %v596
    %vm598 = vweird.f32 %v592
    %vm599 = vweird.f32 %v593
    %vm600 = vmor %vm598, %vm599
    %v601 = vsel %vm600, %v593, %v597
    %v602 = vand.u32 2147483647, %v592
    %vm603 = vcmp.eq.f32.partialorder %v602, 8.507059e+37
    %v604 = vand.u32 %v592, 2147483648
    %v605 = vor.u32 1.1754944e-38, %v604
    %v606 = vsel %vm603, %v605, %v601
    %v607 = vmul.f32 1.0, %v606
    %v608 = vperm.slane %v607, 0
    %v609 = vlaneseq
    %v610 = vshrl.u32 %v609, 7
    %612 = vset.pattern.permute.xlu0 %v610
    %613 = vperm.xlu0 %612, %v608
    %v614 = vpop.permute.xlu0 %613
    %v615 = vlaneseq
    %v616 = vshrl.u32 %v615, 7
    %v617 = vadd.s32 %v616, 8
    %618 = vset.pattern.permute.xlu0 %v617
    %619 = vperm.xlu0 %618, %v608
    %v620 = vpop.permute.xlu0 %619
    %v621 = vlaneseq
    %v622 = vshrl.u32 %v621, 7
    %v623 = vadd.s32 %v622, 16
    %624 = vset.pattern.permute.xlu0 %v623
    %625 = vperm.xlu0 %624, %v608
    %v626 = vpop.permute.xlu0 %625
    %v627 = vlaneseq
    %v628 = vshrl.u32 %v627, 7
    %v629 = vadd.s32 %v628, 24
    %630 = vset.pattern.permute.xlu0 %v629
    %631 = vperm.xlu0 %630, %v608
    %v632 = vpop.permute.xlu0 %631
    %v633 = vperm.slane %v607, 1
    %v634 = vlaneseq
    %v635 = vshrl.u32 %v634, 7
    %637 = vset.pattern.permute.xlu0 %v635
    %638 = vperm.xlu0 %637, %v633
    %v639 = vpop.permute.xlu0 %638
    %v640 = vlaneseq
    %v641 = vshrl.u32 %v640, 7
    %v642 = vadd.s32 %v641, 8
    %643 = vset.pattern.permute.xlu0 %v642
    %644 = vperm.xlu0 %643, %v633
    %v645 = vpop.permute.xlu0 %644
    %v646 = vlaneseq
    %v647 = vshrl.u32 %v646, 7
    %v648 = vadd.s32 %v647, 16
    %649 = vset.pattern.permute.xlu0 %v648
    %650 = vperm.xlu0 %649, %v633
    %v651 = vpop.permute.xlu0 %650
    %v652 = vlaneseq
    %v653 = vshrl.u32 %v652, 7
    %v654 = vadd.s32 %v653, 24
    %655 = vset.pattern.permute.xlu0 %v654
    %656 = vperm.xlu0 %655, %v633
    %v657 = vpop.permute.xlu0 %656
    %v658 = vperm.slane %v607, 2
    %v659 = vlaneseq
    %v660 = vshrl.u32 %v659, 7
    %662 = vset.pattern.permute.xlu0 %v660
    %663 = vperm.xlu0 %662, %v658
    %v664 = vpop.permute.xlu0 %663
    %v665 = vlaneseq
    %v666 = vshrl.u32 %v665, 7
    %v667 = vadd.s32 %v666, 8
    %668 = vset.pattern.permute.xlu0 %v667
    %669 = vperm.xlu0 %668, %v658
    %v670 = vpop.permute.xlu0 %669
    %v671 = vlaneseq
    %v672 = vshrl.u32 %v671, 7
    %v673 = vadd.s32 %v672, 16
    %674 = vset.pattern.permute.xlu0 %v673
    %675 = vperm.xlu0 %674, %v658
    %v676 = vpop.permute.xlu0 %675
    %v677 = vlaneseq
    %v678 = vshrl.u32 %v677, 7
    %v679 = vadd.s32 %v678, 24
    %680 = vset.pattern.permute.xlu0 %v679
    %681 = vperm.xlu0 %680, %v658
    %v682 = vpop.permute.xlu0 %681
    %v683 = vperm.slane %v607, 3
    %v684 = vlaneseq
    %v685 = vshrl.u32 %v684, 7
    %687 = vset.pattern.permute.xlu0 %v685
    %688 = vperm.xlu0 %687, %v683
    %v689 = vpop.permute.xlu0 %688
    %v690 = vlaneseq
    %v691 = vshrl.u32 %v690, 7
    %v692 = vadd.s32 %v691, 8
    %693 = vset.pattern.permute.xlu0 %v692
    %694 = vperm.xlu0 %693, %v683
    %v695 = vpop.permute.xlu0 %694
    %v696 = vlaneseq
    %v697 = vshrl.u32 %v696, 7
    %v698 = vadd.s32 %v697, 16
    %699 = vset.pattern.permute.xlu0 %v698
    %700 = vperm.xlu0 %699, %v683
    %v701 = vpop.permute.xlu0 %700
    %v702 = vlaneseq
    %v703 = vshrl.u32 %v702, 7
    %v704 = vadd.s32 %v703, 24
    %705 = vset.pattern.permute.xlu0 %v704
    %706 = vperm.xlu0 %705, %v683
    %v707 = vpop.permute.xlu0 %706
    %v708 = vmul.f32 %v31, %v614
    %v709 = vmul.f32 %v32, %v620
    %v710 = vmul.f32 %v33, %v626
    %v711 = vmul.f32 %v34, %v632
    %v712 = vmul.f32 %v35, %v639
    %v713 = vmul.f32 %v36, %v645
    %v714 = vmul.f32 %v37, %v651
    %v715 = vmul.f32 %v38, %v657
    %v716 = vmul.f32 %v39, %v664
    %v717 = vmul.f32 %v40, %v670
    %v718 = vmul.f32 %v41, %v676
    %v719 = vmul.f32 %v42, %v682
    %v720 = vmul.f32 %v43, %v689
    %v721 = vmul.f32 %v44, %v695
    %v722 = vmul.f32 %v45, %v701
    %v723 = vmul.f32 %v46, %v707
    %v724 = vsel %vm47, %v548, %v708
    %v725 = vsel %vm47, %v549, %v709
    %v726 = vsel %vm47, %v550, %v710
    %v727 = vsel %vm47, %v551, %v711
    %v728 = vsel %vm47, %v552, %v712
    %v729 = vsel %vm47, %v553, %v713
    %v730 = vsel %vm47, %v554, %v714
    %v731 = vsel %vm47, %v555, %v715
    %v732 = vsel %vm47, %v556, %v716
    %v733 = vsel %vm47, %v557, %v717
    %v734 = vsel %vm47, %v558, %v718
    %v735 = vsel %vm47, %v559, %v719
    %v736 = vsel %vm47, %v560, %v720
    %v737 = vsel %vm47, %v561, %v721
    %v738 = vsel %vm47, %v562, %v722
    %v739 = vsel %vm47, %v563, %v723
    %740 = vst [vmem:[#allocation5] sm:$0xff] %v724
    %741 = vst [vmem:[#allocation5 + $0x8] sm:$0xff] %v725
    %742 = vst [vmem:[#allocation5 + $0x10] sm:$0xff] %v726
    %743 = vst [vmem:[#allocation5 + $0x18] sm:$0xff] %v727
    %744 = vst [vmem:[#allocation5 + $0x20] sm:$0xff] %v728
    %745 = vst [vmem:[#allocation5 + $0x28] sm:$0xff] %v729
    %746 = vst [vmem:[#allocation5 + $0x30] sm:$0xff] %v730
    %747 = vst [vmem:[#allocation5 + $0x38] sm:$0xff] %v731
    %748 = vst [vmem:[#allocation5 + $0x40] sm:$0xff] %v732
    %749 = vst [vmem:[#allocation5 + $0x48] sm:$0xff] %v733
    %750 = vst [vmem:[#allocation5 + $0x50] sm:$0xff] %v734
    %751 = vst [vmem:[#allocation5 + $0x58] sm:$0xff] %v735
    %752 = vst [vmem:[#allocation5 + $0x60] sm:$0xff] %v736
    %753 = vst [vmem:[#allocation5 + $0x68] sm:$0xff] %v737
    %754 = vst [vmem:[#allocation5 + $0x70] sm:$0xff] %v738
    %755 = vst [vmem:[#allocation5 + $0x78] sm:$0xff] %v739
    // Predicated region
    $region18: #{tpu_custom_call.1} parent=1 // pred_check
      _
    $region19: #{tpu_custom_call.1} parent=1 // pred_check_branch
      %757 = sbr.rel (0) target = $region21
    $region20: #{tpu_custom_call.1} parent=1 // pred_region
      %759 = vsyncadd [#allocation4], 0
      %s760 = sshll.u32 [#allocation5], 4
      %s761 = int_to_ptr.vmem [resolvable:$true] %s760
      %s762 = sshll.u32 %s3, 4
      %s763 = int_to_ptr.hbm [resolvable:$true] %s762
      %768 = dma.vmem_to_hbm [thread:$0]  %s761, 2048, %s763, [#allocation4], 128, 128, 8
    $region21: #{tpu_custom_call.1} parent=1 // pred_fallthru
      _
    // Predicated region
    $region22: #{tpu_custom_call.1} parent=1 // pred_check
      _
    $region23: #{tpu_custom_call.1} parent=1 // pred_check_branch
      %770 = sbr.rel (0) target = $region25
    $region24: #{tpu_custom_call.1} parent=1 // pred_region
      %772 = dma.done [#allocation4], 2048
    $region25: #{tpu_custom_call.1} parent=1 // pred_fallthru
      _
    %773 = vsyncpa [#allocation3], 1
    %774 = vsyncpa [#allocation4], 1

</llo_original>
